<compile_context>
chip_gen: v5e
topology: v5e:2x2
jax: 0.10.0
libtpu: 0.0.40
codegen_flags: <defaults>
</compile_context>

<pallas_src>
import math

import jax
import jax.numpy as jnp
from jax.experimental import pallas as pl
from jax.experimental.pallas import tpu as pltpu


def positional_encoding_table(max_len, d_model, dtype=jnp.float32):
    """Same buffer the PyTorch module builds in __init__ (shape [max_len, d_model])."""
    position = jnp.arange(max_len, dtype=jnp.float32)[:, None]              # (L, 1)
    div_term = jnp.exp(
        jnp.arange(0, d_model, 2, dtype=jnp.float32) * (-math.log(10000.0) / d_model)
    )                                                                        # (D/2,)
    angles = position * div_term                                             # (L, D/2)
    pe = jnp.zeros((max_len, d_model), jnp.float32)
    pe = pe.at[:, 0::2].set(jnp.sin(angles))
    pe = pe.at[:, 1::2].set(jnp.cos(angles))
    return pe.astype(dtype)


def _pe_add_kernel(x_ref, pe_ref, out_ref):
    # x_ref/out_ref: (block_b, block_s, D), pe_ref: (block_s, D)
    # Broadcast-add over the batch dim; single VPU pass, lane-dense store.
    out_ref[...] = x_ref[...] + pe_ref[...]


def _largest_divisor(n, cap, quantum):
    """Largest divisor of n that is <= cap and a multiple of `quantum` (else n)."""
    if n <= cap:
        return n
    cap = max(quantum, (cap // quantum) * quantum)
    for b in range(cap, quantum - 1, -quantum):
        if n % b == 0:
            return b
    return n


def positional_encoding(x, pe, dropout_rate=0.0):
    """Pallas implementation of PositionalEncoding.forward.

    x:  [B, S, D]   input embeddings
    pe: [max_len, D] precomputed sinusoidal table (max_len >= S)
    Returns x + pe[:S] (dropout is identity at inference / dropout_rate=0.0).
    """
    del dropout_rate  # identity at inference
    B, S, D = x.shape
    pe_slice = pe[:S].astype(x.dtype)  # (S, D)

    itemsize = jnp.dtype(x.dtype).itemsize
    bytes_per_row = D * itemsize
    # Keep each x block around <= 4 MiB so double-buffered in+out (+pe) fits
    # comfortably in scoped VMEM on every chip generation (incl. v7x's 64 MiB).
    max_rows_per_block = max(8, (4 << 20) // max(1, bytes_per_row))
    block_s = _largest_divisor(S, max_rows_per_block, 8)

    # Batch the whole batch into one step when it fits; otherwise one batch/step.
    block_b = B if B * block_s * bytes_per_row <= (8 << 20) else 1
    while B % block_b != 0:
        block_b -= 1
    block_b = max(block_b, 1)

    n_s = S // block_s
    n_b = B // block_b

    out = pl.pallas_call(
        _pe_add_kernel,
        out_shape=jax.ShapeDtypeStruct((B, S, D), x.dtype),
        grid_spec=pltpu.PrefetchScalarGridSpec(
            num_scalar_prefetch=0,
            # batch axis innermost so the pe block index stays constant across
            # consecutive steps (tile reuse, no re-DMA of pe per batch).
            grid=(n_s, n_b),
            in_specs=[
                pl.BlockSpec((block_b, block_s, D), lambda s, b: (b, s, 0)),
                pl.BlockSpec((block_s, D), lambda s, b: (s, 0)),
            ],
            out_specs=pl.BlockSpec((block_b, block_s, D), lambda s, b: (b, s, 0)),
        ),
        compiler_params=pltpu.CompilerParams(
            dimension_semantics=("parallel", "parallel"),
        ),
    )(x, pe_slice)

    return out


def _reference(x, pe):
    S = x.shape[1]
    return x + pe[None, :S, :].astype(x.dtype)


if __name__ == "__main__":
    # Small shapes consistent with the module: batch=2, seq=16, d_model=32.
    B, S, D = 2, 16, 32
    MAX_LEN = 128

    rng = jax.random.PRNGKey(0)
    x = jax.random.normal(rng, (B, S, D), dtype=jnp.float32)

    pe = positional_encoding_table(MAX_LEN, D, dtype=jnp.float32)

    out = positional_encoding(x, pe, dropout_rate=0.0)
    jax.block_until_ready(out)

    ref = _reference(x, pe)
    assert out.shape == (B, S, D), "shape mismatch"
    assert jnp.allclose(out, ref, atol=1e-6, rtol=1e-6), "output mismatch"

    print("KERNEL_OK")
</pallas_src>

<mosaic_0001>
module attributes {stable_mosaic.version = 11 : i64} {
  func.func @_pe_add_kernel(%arg0: i32, %arg1: i32, %arg2: memref<2x16x32xf32, #tpu.memory_space<vmem>>, %arg3: memref<16x32xf32, #tpu.memory_space<vmem>>, %arg4: memref<2x16x32xf32, #tpu.memory_space<vmem>>) attributes {dimension_semantics = [#tpu.dimension_semantics<parallel>, #tpu.dimension_semantics<parallel>], iteration_bounds = array<i64: 1, 1>, scalar_prefetch = 0 : i64, scratch_operands = 0 : i64, tpu.core_type = #tpu.core_type<tc>, window_params = [{transform_indices = @transform_0, window_bounds = array<i64: 2, 16, 32>}, {transform_indices = @transform_1, window_bounds = array<i64: 16, 32>}, {transform_indices = @transform_2, window_bounds = array<i64: 2, 16, 32>}]} {
    %c0 = arith.constant 0 : index
    %c0_0 = arith.constant 0 : index
    %c0_1 = arith.constant 0 : index
    %0 = vector.load %arg2[%c0, %c0_0, %c0_1] : memref<2x16x32xf32, #tpu.memory_space<vmem>>, vector<2x16x32xf32>
    %c0_2 = arith.constant 0 : index
    %c0_3 = arith.constant 0 : index
    %1 = vector.load %arg3[%c0_2, %c0_3] : memref<16x32xf32, #tpu.memory_space<vmem>>, vector<16x32xf32>
    %2 = vector.shape_cast %1 : vector<16x32xf32> to vector<1x16x32xf32>
    %3 = vector.broadcast %2 : vector<1x16x32xf32> to vector<2x16x32xf32>
    %4 = arith.addf %0, %3 : vector<2x16x32xf32>
    %c0_4 = arith.constant 0 : index
    %c0_5 = arith.constant 0 : index
    %c0_6 = arith.constant 0 : index
    %5 = vector.load %arg4[%c0_4, %c0_5, %c0_6] : memref<2x16x32xf32, #tpu.memory_space<vmem>>, vector<2x16x32xf32>
    tpu.vector_store %arg4[%c0_4, %c0_5, %c0_6], %4 {strides = array<i32>} : memref<2x16x32xf32, #tpu.memory_space<vmem>>, vector<2x16x32xf32>,
    return
  }
  func.func @transform_0(%arg0: i32, %arg1: i32) -> (i32, i32, i32) {
    %c0_i32 = arith.constant 0 : i32
    %c0_i32_0 = arith.constant 0 : i32
    return %arg1, %arg0, %c0_i32 : i32, i32, i32
  }
  func.func @transform_1(%arg0: i32, %arg1: i32) -> (i32, i32) {
    %c0_i32 = arith.constant 0 : i32
    %c0_i32_0 = arith.constant 0 : i32
    return %arg0, %c0_i32 : i32, i32
  }
  func.func @transform_2(%arg0: i32, %arg1: i32) -> (i32, i32, i32) {
    %c0_i32 = arith.constant 0 : i32
    %c0_i32_0 = arith.constant 0 : i32
    return %arg1, %arg0, %c0_i32 : i32, i32, i32
  }
}

</mosaic_0001>

<llo_original>
// kernel: tpu_custom_call.1
$region0: #{tpu_custom_call.1}
  #allocation0 [shape = 'u32[]', space=smem, size = 0x4, offset = 0x4, fixed_abs, tag = 'smem constant byte address 0x4 - core index']
  #allocation1 [shape = 'u32[72,128]{1,0:T(1,128)}', space=vmem, size = 0x9000, scoped, tag = 'internal scratch']
  %s0 = inlined_call_operand.hbm [shape: f32[2,16,32], index: 0, kind: input, shape index: {}]
  %s1 = inlined_call_operand.hbm [shape: f32[16,32], index: 1, kind: input, shape index: {}]
  %s2 = inlined_call_operand.hbm [shape: f32[2,16,32], index: 2, kind: output, shape index: {}]
  %s3 = sld [smem:[#allocation0]]
  $region26: #{tpu_custom_call.1} parent=0
    _
  %s5 = ssub.s32 1, %s3
  %s6 = scalar_select 0, %s5, %s3
  $region1: #{tpu_custom_call.1} parent=0
    #allocation2 [shape = 'u8[16384]{0}', space=vmem, size = 0x4000, scoped, tag = 'input window, operand 0, single buffered']
    #allocation3 [shape = 's32[1]{0}', space=sflag, size = 0x4, scoped, tag = 'scoped memory for tpu_custom_call.1']
    #allocation4 [shape = 's32[1]{0}', space=sflag, size = 0x4, scoped, tag = 'scoped memory for tpu_custom_call.1']
    #allocation5 [shape = 'u8[8192]{0}', space=vmem, size = 0x2000, scoped, tag = 'input window, operand 1, single buffered']
    #allocation6 [shape = 's32[1]{0}', space=sflag, size = 0x4, scoped, tag = 'scoped memory for tpu_custom_call.1']
    #allocation7 [shape = 'u8[16384]{0}', space=vmem, size = 0x4000, scoped, tag = 'output window, operand 0, single buffered']
    %7 = vsyncpa [#allocation3], 0
    %8 = vsyncpa [#allocation6], 0
    %9 = vsyncpa [#allocation4], 0
    // Predicated region
    $region2: #{tpu_custom_call.1} parent=1 // pred_check
      _
    $region3: #{tpu_custom_call.1} parent=1 // pred_check_branch
      %11 = sbr.rel (0) target = $region5
    $region4: #{tpu_custom_call.1} parent=1 // pred_region
      %13 = vsyncadd [#allocation3], 0
      %s14 = sshll.u32 %s0, 4
      %s15 = int_to_ptr.hbm [resolvable:$true] %s14
      %s16 = sshll.u32 [#allocation2], 4
      %s17 = int_to_ptr.vmem [resolvable:$true] %s16
      %22 = dma.hbm_to_vmem [thread:$0]  %s15, 512, %s17, [#allocation3], 128, 128, 8
    $region5: #{tpu_custom_call.1} parent=1 // pred_fallthru
      _
    // Predicated region
    $region6: #{tpu_custom_call.1} parent=1 // pred_check
      _
    $region7: #{tpu_custom_call.1} parent=1 // pred_check_branch
      %24 = sbr.rel (0) target = $region9
    $region8: #{tpu_custom_call.1} parent=1 // pred_region
      %26 = vsyncadd [#allocation6], 0
      %s27 = sshll.u32 %s1, 4
      %s28 = int_to_ptr.hbm [resolvable:$true] %s27
      %s29 = sshll.u32 [#allocation5], 4
      %s30 = int_to_ptr.vmem [resolvable:$true] %s29
      %35 = dma.hbm_to_vmem [thread:$0]  %s28, 256, %s30, [#allocation6], 128, 128, 8
    $region9: #{tpu_custom_call.1} parent=1 // pred_fallthru
      _
    // Predicated region
    $region10: #{tpu_custom_call.1} parent=1 // pred_check
      _
    $region11: #{tpu_custom_call.1} parent=1 // pred_check_branch
      %37 = sbr.rel (0) target = $region13
    $region12: #{tpu_custom_call.1} parent=1 // pred_region
      %39 = dma.done [#allocation3], 512
    $region13: #{tpu_custom_call.1} parent=1 // pred_fallthru
      _
    // Predicated region
    $region14: #{tpu_custom_call.1} parent=1 // pred_check
      _
    $region15: #{tpu_custom_call.1} parent=1 // pred_check_branch
      %41 = sbr.rel (0) target = $region17
    $region16: #{tpu_custom_call.1} parent=1 // pred_region
      %43 = dma.done [#allocation6], 256
    $region17: #{tpu_custom_call.1} parent=1 // pred_fallthru
      _
    %v44 = vld [vmem:[#allocation2] sm:$0xff]
    %v45 = vld [vmem:[#allocation2 + $0x8] sm:$0xff]
    %v46 = vld [vmem:[#allocation2 + $0x10] sm:$0xff]
    %v47 = vld [vmem:[#allocation2 + $0x18] sm:$0xff]
    %v48 = vld [vmem:[#allocation5] sm:$0xff]
    %v49 = vld [vmem:[#allocation5 + $0x8] sm:$0xff]
    %v50 = vadd.f32 %v44, %v48
    %v51 = vadd.f32 %v45, %v49
    %v52 = vadd.f32 %v46, %v48
    %v53 = vadd.f32 %v47, %v49
    %vm54 = vcmask 261120
    %55 = vst.msk [vmem:[#allocation7] sm:$0xff] %vm54, %v50
    %56 = vst.msk [vmem:[#allocation7 + $0x8] sm:$0xff] %vm54, %v51
    %57 = vst.msk [vmem:[#allocation7 + $0x10] sm:$0xff] %vm54, %v52
    %58 = vst.msk [vmem:[#allocation7 + $0x18] sm:$0xff] %vm54, %v53
    // Predicated region
    $region18: #{tpu_custom_call.1} parent=1 // pred_check
      _
    $region19: #{tpu_custom_call.1} parent=1 // pred_check_branch
      %60 = sbr.rel (0) target = $region21
    $region20: #{tpu_custom_call.1} parent=1 // pred_region
      %62 = vsyncadd [#allocation4], 0
      %s63 = sshll.u32 [#allocation7], 4
      %s64 = int_to_ptr.vmem [resolvable:$true] %s63
      %s65 = sshll.u32 %s2, 4
      %s66 = int_to_ptr.hbm [resolvable:$true] %s65
      %71 = dma.vmem_to_hbm [thread:$0]  %s64, 512, %s66, [#allocation4], 128, 128, 8
    $region21: #{tpu_custom_call.1} parent=1 // pred_fallthru
      _
    // Predicated region
    $region22: #{tpu_custom_call.1} parent=1 // pred_check
      _
    $region23: #{tpu_custom_call.1} parent=1 // pred_check_branch
      %73 = sbr.rel (0) target = $region25
    $region24: #{tpu_custom_call.1} parent=1 // pred_region
      %75 = dma.done [#allocation4], 512
    $region25: #{tpu_custom_call.1} parent=1 // pred_fallthru
      _
    %76 = vsyncpa [#allocation3], 1
    %77 = vsyncpa [#allocation6], 1
    %78 = vsyncpa [#allocation4], 1

</llo_original>
